<compile_context>
chip_gen: v7x
topology: tpu7x:2x2x1
jax: 0.10.0
libtpu: 0.0.40
codegen_flags: <defaults>
</compile_context>

<pallas_src>
import functools

import jax
import jax.numpy as jnp
from jax import lax
from jax.experimental import pallas as pl
from jax.experimental.pallas import tpu as pltpu

EPS = 1e-5


def _round_up(v, m):
    return (v + m - 1) // m * m


def residual_block_kernel(x_ref, w1t_ref, bn1_ref, w2t_ref, bn2_ref, o_ref,
                          acc_ref, *, inv_n, pad_rows):
    k = pl.program_id(0)

    @pl.when(k == 0)
    def _init():
        acc_ref[...] = jnp.zeros_like(acc_ref)

    x = x_ref[...]                                        # (Np, Fp) f32, resident

    # ---- Linear 1, one column tile of W1^T:  h1 = x @ W1^T[:, k-tile]  (bf16 in, f32 acc)
    h1 = jnp.dot(x.astype(jnp.bfloat16), w1t_ref[...],
                 preferred_element_type=jnp.float32)      # (Np, tk)

    # ---- BatchNorm1d #1 (training-mode batch stats, biased var), folded to scale/shift.
    #      Padded batch rows of h1 are exactly 0 (zero x rows, no bias), so the mean
    #      with the true 1/N is exact; the variance gets a -P*mu^2 correction.
    mu1 = jnp.sum(h1, axis=0, keepdims=True) * inv_n      # (1, tk)
    d1 = h1 - mu1
    sq1 = jnp.sum(d1 * d1, axis=0, keepdims=True)
    if pad_rows:
        sq1 = sq1 - float(pad_rows) * (mu1 * mu1)
    var1 = sq1 * inv_n
    bn1 = bn1_ref[...]                                    # (2, tk): [gamma; beta]
    scale1 = bn1[0:1, :] * lax.rsqrt(var1 + EPS)
    shift1 = bn1[1:2, :] - mu1 * scale1

    # ---- BN1 (one FMA) + ReLU. Padded feature columns: gamma=0 -> scale=shift=0 -> stay 0.
    hb1 = jnp.maximum(h1 * scale1 + shift1, 0.0)
    if pad_rows:
        valid = lax.broadcasted_iota(jnp.int32, hb1.shape, 0) < (hb1.shape[0] - pad_rows)
        hb1 = jnp.where(valid, hb1, 0.0)                  # keep padded rows out of Linear2/BN2

    # ---- Linear 2 partial product (row tile of W2^T), accumulated in f32 VMEM.
    acc_ref[...] += jnp.dot(hb1.astype(jnp.bfloat16), w2t_ref[...],
                            preferred_element_type=jnp.float32)

    # ---- Epilogue at the last contraction tile: BN2 + residual add + ReLU.
    @pl.when(k == pl.num_programs(0) - 1)
    def _finalize():
        acc = acc_ref[...]                                # (Np, Fp)
        mu2 = jnp.sum(acc, axis=0, keepdims=True) * inv_n
        d2 = acc - mu2
        sq2 = jnp.sum(d2 * d2, axis=0, keepdims=True)
        if pad_rows:
            sq2 = sq2 - float(pad_rows) * (mu2 * mu2)
        var2 = sq2 * inv_n
        bn2 = bn2_ref[...]
        scale2 = bn2[0:1, :] * lax.rsqrt(var2 + EPS)
        shift2 = bn2[1:2, :] - mu2 * scale2
        o_ref[...] = jnp.maximum(acc * scale2 + shift2 + x, 0.0).astype(o_ref.dtype)


def residual_block(x, params, *, tile_k=512, matmul_dtype=jnp.bfloat16):
    """x: (N, F) float32; params: dict from init_params (PyTorch-layout weights)."""
    N, F = x.shape
    Np = _round_up(max(N, 8), 8)          # f32 sublane alignment
    Fp = _round_up(max(F, 128), 128)      # lane-dense MXU tiles / unmasked stores
    tk = min(Fp, tile_k)
    num_k = Fp // tk
    pad_rows = Np - N

    f32 = jnp.float32
    xp = jnp.zeros((Np, Fp), f32).at[:N, :F].set(x.astype(f32))
    # Weights pre-transposed to (F_in, F_out), zero-padded, bf16 (MXU + halved DMA bytes).
    w1t = jnp.zeros((Fp, Fp), matmul_dtype).at[:F, :F].set(params["w1"].T.astype(matmul_dtype))
    w2t = jnp.zeros((Fp, Fp), matmul_dtype).at[:F, :F].set(params["w2"].T.astype(matmul_dtype))
    # Per-feature BN params stacked [gamma; beta]; gamma=0 on padded feature columns.
    bn1 = jnp.zeros((2, Fp), f32).at[0, :F].set(params["g1"]).at[1, :F].set(params["be1"])
    bn2 = jnp.zeros((2, Fp), f32).at[0, :F].set(params["g2"]).at[1, :F].set(params["be2"])
    # NOTE: Linear biases b1/b2 are intentionally NOT passed: a per-feature bias added
    # before a training-mode BatchNorm is cancelled by the mean subtraction (exact).

    kernel = functools.partial(residual_block_kernel, inv_n=1.0 / N, pad_rows=pad_rows)

    out = pl.pallas_call(
        kernel,
        out_shape=jax.ShapeDtypeStruct((Np, Fp), x.dtype),
        grid_spec=pltpu.PrefetchScalarGridSpec(
            num_scalar_prefetch=0,
            grid=(num_k,),
            in_specs=[
                pl.BlockSpec((Np, Fp), lambda k: (0, 0)),   # x (VMEM-resident across k)
                pl.BlockSpec((Fp, tk), lambda k: (0, k)),   # W1^T column tile (pipelined)
                pl.BlockSpec((2, tk), lambda k: (0, k)),    # [gamma1; beta1] tile
                pl.BlockSpec((tk, Fp), lambda k: (k, 0)),   # W2^T row tile (pipelined)
                pl.BlockSpec((2, Fp), lambda k: (0, 0)),    # [gamma2; beta2]
            ],
            out_specs=pl.BlockSpec((Np, Fp), lambda k: (0, 0)),
            scratch_shapes=[pltpu.VMEM((Np, Fp), jnp.float32)],   # Linear2 accumulator
        ),
        compiler_params=pltpu.CompilerParams(
            dimension_semantics=("arbitrary",),   # k is the Linear2 contraction axis
            vmem_limit_bytes=64 * 1024 * 1024,
        ),
    )(xp, w1t, bn1, w2t, bn2)
    return out[:N, :F]


def init_params(key, size):
    """Deterministic init mimicking PyTorch defaults:
       Linear: U(-1/sqrt(size), 1/sqrt(size)); BN: gamma=1, beta=0."""
    ks = jax.random.split(key, 4)
    bound = 1.0 / jnp.sqrt(size)
    u = lambda k, shp: jax.random.uniform(k, shp, jnp.float32, -bound, bound)
    return {
        "w1": u(ks[0], (size, size)), "b1": u(ks[1], (size,)),
        "g1": jnp.ones((size,), jnp.float32), "be1": jnp.zeros((size,), jnp.float32),
        "w2": u(ks[2], (size, size)), "b2": u(ks[3], (size,)),
        "g2": jnp.ones((size,), jnp.float32), "be2": jnp.zeros((size,), jnp.float32),
    }


def residual_block_ref(x, p, matmul_dtype=jnp.bfloat16):
    """Pure-JAX reference (training-mode BN, biases kept, same bf16 matmul inputs)."""
    def mm(a, b):
        return jnp.dot(a.astype(matmul_dtype), b.astype(matmul_dtype),
                       preferred_element_type=jnp.float32)

    def bn(h, g, b):
        mu = jnp.mean(h, axis=0, keepdims=True)
        var = jnp.mean((h - mu) ** 2, axis=0, keepdims=True)
        return g * (h - mu) * lax.rsqrt(var + EPS) + b

    h = mm(x, p["w1"].T) + p["b1"]
    h = jnp.maximum(bn(h, p["g1"], p["be1"]), 0.0)
    h = mm(h, p["w2"].T) + p["b2"]
    h = bn(h, p["g2"], p["be2"])
    return jnp.maximum(h + x, 0.0)


if __name__ == "__main__":
    N, SIZE = 8, 32
    key = jax.random.PRNGKey(0)
    kx, kp = jax.random.split(key)
    x = jax.random.normal(kx, (N, SIZE), jnp.float32)
    params = init_params(kp, SIZE)

    out = residual_block(x, params)
    out = jax.block_until_ready(out)

    ref = residual_block_ref(x, params)
    assert out.shape == (N, SIZE)
    assert bool(jnp.all(jnp.isfinite(out)))
    assert jnp.allclose(out, ref, atol=1e-2, rtol=1e-2), \
        float(jnp.max(jnp.abs(out - ref)))
    print("KERNEL_OK")
</pallas_src>

<mosaic_0001>
module attributes {stable_mosaic.version = 11 : i64} {
  func.func @residual_block_kernel(%arg0: i32, %arg1: memref<8x128xf32, #tpu.memory_space<vmem>>, %arg2: memref<128x128xbf16, #tpu.memory_space<vmem>>, %arg3: memref<2x128xf32, #tpu.memory_space<vmem>>, %arg4: memref<128x128xbf16, #tpu.memory_space<vmem>>, %arg5: memref<2x128xf32, #tpu.memory_space<vmem>>, %arg6: memref<8x128xf32, #tpu.memory_space<vmem>>, %arg7: memref<8x128xf32, #tpu.memory_space<vmem>>) attributes {dimension_semantics = [#tpu.dimension_semantics<arbitrary>], iteration_bounds = array<i64: 1>, scalar_prefetch = 0 : i64, scratch_operands = 1 : i64, tpu.core_type = #tpu.core_type<tc>, window_params = [{pipeline_mode = #tpu.pipeline_mode<synchronous>, transform_indices = @transform_0, window_bounds = array<i64: 8, 128>}, {transform_indices = @transform_1, window_bounds = array<i64: 128, 128>}, {transform_indices = @transform_2, window_bounds = array<i64: 2, 128>}, {transform_indices = @transform_3, window_bounds = array<i64: 128, 128>}, {pipeline_mode = #tpu.pipeline_mode<synchronous>, transform_indices = @transform_4, window_bounds = array<i64: 2, 128>}, {pipeline_mode = #tpu.pipeline_mode<synchronous>, transform_indices = @transform_5, window_bounds = array<i64: 8, 128>}]} {
    %c0_i32 = arith.constant 0 : i32
    %0 = arith.cmpi eq, %arg0, %c0_i32 : i32
    %1 = arith.extui %0 : i1 to i32
    %c0_i32_0 = arith.constant 0 : i32
    %2 = arith.cmpi ne, %1, %c0_i32_0 : i32
    scf.if %2 {
      %cst_21 = arith.constant 0.000000e+00 : f32
      %42 = vector.broadcast %cst_21 : f32 to vector<8x128xf32>
      %c0_22 = arith.constant 0 : index
      %c0_23 = arith.constant 0 : index
      %43 = vector.load %arg7[%c0_22, %c0_23] : memref<8x128xf32, #tpu.memory_space<vmem>>, vector<8x128xf32>
      tpu.vector_store %arg7[%c0_22, %c0_23], %42 {strides = array<i32>} : memref<8x128xf32, #tpu.memory_space<vmem>>, vector<8x128xf32>,
    } else {
    }
    %c0 = arith.constant 0 : index
    %c0_1 = arith.constant 0 : index
    %3 = vector.load %arg1[%c0, %c0_1] : memref<8x128xf32, #tpu.memory_space<vmem>>, vector<8x128xf32>
    %4 = arith.truncf %3 : vector<8x128xf32> to vector<8x128xbf16>
    %c0_2 = arith.constant 0 : index
    %c0_3 = arith.constant 0 : index
    %5 = vector.load %arg2[%c0_2, %c0_3] : memref<128x128xbf16, #tpu.memory_space<vmem>>, vector<128x128xbf16>
    %cst = arith.constant dense<0.000000e+00> : vector<8x128xf32>
    %6 = tpu.matmul %4, %5, %cst {dimension_numbers = #tpu.dot_dimension_numbers<[1], [0], [0], [1], [0, 0, 1, 1], [], []>} : vector<8x128xbf16>, vector<128x128xbf16>, vector<8x128xf32> -> vector<8x128xf32>
    %cst_4 = arith.constant dense<0.000000e+00> : vector<128xf32>
    %7 = vector.multi_reduction <add>, %6, %cst_4 [0] : vector<8x128xf32> to vector<128xf32>
    %8 = vector.shape_cast %7 : vector<128xf32> to vector<1x128xf32>
    %cst_5 = arith.constant 1.250000e-01 : f32
    %9 = vector.broadcast %cst_5 : f32 to vector<1x128xf32>
    %10 = arith.mulf %8, %9 : vector<1x128xf32>
    %11 = vector.broadcast %10 : vector<1x128xf32> to vector<8x128xf32>
    %12 = arith.subf %6, %11 : vector<8x128xf32>
    %13 = arith.mulf %12, %12 : vector<8x128xf32>
    %cst_6 = arith.constant dense<0.000000e+00> : vector<128xf32>
    %14 = vector.multi_reduction <add>, %13, %cst_6 [0] : vector<8x128xf32> to vector<128xf32>
    %15 = vector.shape_cast %14 : vector<128xf32> to vector<1x128xf32>
    %cst_7 = arith.constant 1.250000e-01 : f32
    %16 = vector.broadcast %cst_7 : f32 to vector<1x128xf32>
    %17 = arith.mulf %15, %16 : vector<1x128xf32>
    %c0_8 = arith.constant 0 : index
    %c0_9 = arith.constant 0 : index
    %18 = vector.load %arg3[%c0_8, %c0_9] : memref<2x128xf32, #tpu.memory_space<vmem>>, vector<2x128xf32>
    %19 = vector.extract_strided_slice %18 {offsets = [0, 0], sizes = [1, 128], strides = [1, 1]} : vector<2x128xf32> to vector<1x128xf32>
    %cst_10 = arith.constant 9.99999974E-6 : f32
    %20 = vector.broadcast %cst_10 : f32 to vector<1x128xf32>
    %21 = arith.addf %17, %20 : vector<1x128xf32>
    %22 = math.rsqrt %21 : vector<1x128xf32>
    %23 = arith.mulf %19, %22 : vector<1x128xf32>
    %24 = vector.extract_strided_slice %18 {offsets = [1, 0], sizes = [1, 128], strides = [1, 1]} : vector<2x128xf32> to vector<1x128xf32>
    %25 = arith.mulf %10, %23 : vector<1x128xf32>
    %26 = arith.subf %24, %25 : vector<1x128xf32>
    %27 = vector.broadcast %23 : vector<1x128xf32> to vector<8x128xf32>
    %28 = arith.mulf %6, %27 : vector<8x128xf32>
    %29 = vector.broadcast %26 : vector<1x128xf32> to vector<8x128xf32>
    %30 = arith.addf %28, %29 : vector<8x128xf32>
    %cst_11 = arith.constant 0.000000e+00 : f32
    %31 = vector.broadcast %cst_11 : f32 to vector<8x128xf32>
    %32 = arith.maximumf %30, %31 : vector<8x128xf32>
    %c0_12 = arith.constant 0 : index
    %c0_13 = arith.constant 0 : index
    %33 = vector.load %arg7[%c0_12, %c0_13] : memref<8x128xf32, #tpu.memory_space<vmem>>, vector<8x128xf32>
    %34 = arith.truncf %32 : vector<8x128xf32> to vector<8x128xbf16>
    %c0_14 = arith.constant 0 : index
    %c0_15 = arith.constant 0 : index
    %35 = vector.load %arg4[%c0_14, %c0_15] : memref<128x128xbf16, #tpu.memory_space<vmem>>, vector<128x128xbf16>
    %cst_16 = arith.constant dense<0.000000e+00> : vector<8x128xf32>
    %36 = tpu.matmul %34, %35, %cst_16 {dimension_numbers = #tpu.dot_dimension_numbers<[1], [0], [0], [1], [0, 0, 1, 1], [], []>} : vector<8x128xbf16>, vector<128x128xbf16>, vector<8x128xf32> -> vector<8x128xf32>
    %37 = arith.addf %33, %36 : vector<8x128xf32>
    %c0_17 = arith.constant 0 : index
    %c0_18 = arith.constant 0 : index
    %38 = vector.load %arg7[%c0_17, %c0_18] : memref<8x128xf32, #tpu.memory_space<vmem>>, vector<8x128xf32>
    tpu.vector_store %arg7[%c0_17, %c0_18], %37 {strides = array<i32>} : memref<8x128xf32, #tpu.memory_space<vmem>>, vector<8x128xf32>,
    %c0_i32_19 = arith.constant 0 : i32
    %39 = arith.cmpi eq, %arg0, %c0_i32_19 : i32
    %40 = arith.extui %39 : i1 to i32
    %c0_i32_20 = arith.constant 0 : i32
    %41 = arith.cmpi ne, %40, %c0_i32_20 : i32
    scf.if %41 {
      %c0_21 = arith.constant 0 : index
      %c0_22 = arith.constant 0 : index
      %42 = vector.load %arg7[%c0_21, %c0_22] : memref<8x128xf32, #tpu.memory_space<vmem>>, vector<8x128xf32>
      %cst_23 = arith.constant dense<0.000000e+00> : vector<128xf32>
      %43 = vector.multi_reduction <add>, %42, %cst_23 [0] : vector<8x128xf32> to vector<128xf32>
      %44 = vector.shape_cast %43 : vector<128xf32> to vector<1x128xf32>
      %cst_24 = arith.constant 1.250000e-01 : f32
      %45 = vector.broadcast %cst_24 : f32 to vector<1x128xf32>
      %46 = arith.mulf %44, %45 : vector<1x128xf32>
      %47 = vector.broadcast %46 : vector<1x128xf32> to vector<8x128xf32>
      %48 = arith.subf %42, %47 : vector<8x128xf32>
      %49 = arith.mulf %48, %48 : vector<8x128xf32>
      %cst_25 = arith.constant dense<0.000000e+00> : vector<128xf32>
      %50 = vector.multi_reduction <add>, %49, %cst_25 [0] : vector<8x128xf32> to vector<128xf32>
      %51 = vector.shape_cast %50 : vector<128xf32> to vector<1x128xf32>
      %cst_26 = arith.constant 1.250000e-01 : f32
      %52 = vector.broadcast %cst_26 : f32 to vector<1x128xf32>
      %53 = arith.mulf %51, %52 : vector<1x128xf32>
      %c0_27 = arith.constant 0 : index
      %c0_28 = arith.constant 0 : index
      %54 = vector.load %arg5[%c0_27, %c0_28] : memref<2x128xf32, #tpu.memory_space<vmem>>, vector<2x128xf32>
      %55 = vector.extract_strided_slice %54 {offsets = [0, 0], sizes = [1, 128], strides = [1, 1]} : vector<2x128xf32> to vector<1x128xf32>
      %cst_29 = arith.constant 9.99999974E-6 : f32
      %56 = vector.broadcast %cst_29 : f32 to vector<1x128xf32>
      %57 = arith.addf %53, %56 : vector<1x128xf32>
      %58 = math.rsqrt %57 : vector<1x128xf32>
      %59 = arith.mulf %55, %58 : vector<1x128xf32>
      %60 = vector.extract_strided_slice %54 {offsets = [1, 0], sizes = [1, 128], strides = [1, 1]} : vector<2x128xf32> to vector<1x128xf32>
      %61 = arith.mulf %46, %59 : vector<1x128xf32>
      %62 = arith.subf %60, %61 : vector<1x128xf32>
      %63 = vector.broadcast %59 : vector<1x128xf32> to vector<8x128xf32>
      %64 = arith.mulf %42, %63 : vector<8x128xf32>
      %65 = vector.broadcast %62 : vector<1x128xf32> to vector<8x128xf32>
      %66 = arith.addf %64, %65 : vector<8x128xf32>
      %67 = arith.addf %66, %3 : vector<8x128xf32>
      %cst_30 = arith.constant 0.000000e+00 : f32
      %68 = vector.broadcast %cst_30 : f32 to vector<8x128xf32>
      %69 = arith.maximumf %67, %68 : vector<8x128xf32>
      %c0_31 = arith.constant 0 : index
      %c0_32 = arith.constant 0 : index
      %70 = vector.load %arg6[%c0_31, %c0_32] : memref<8x128xf32, #tpu.memory_space<vmem>>, vector<8x128xf32>
      tpu.vector_store %arg6[%c0_31, %c0_32], %69 {strides = array<i32>} : memref<8x128xf32, #tpu.memory_space<vmem>>, vector<8x128xf32>,
    } else {
    }
    return
  }
  func.func @transform_0(%arg0: i32) -> (i32, i32) {
    %c0_i32 = arith.constant 0 : i32
    %c0_i32_0 = arith.constant 0 : i32
    %c0_i32_1 = arith.constant 0 : i32
    return %c0_i32, %c0_i32_0 : i32, i32
  }
  func.func @transform_1(%arg0: i32) -> (i32, i32) {
    %c0_i32 = arith.constant 0 : i32
    %c0_i32_0 = arith.constant 0 : i32
    return %c0_i32, %arg0 : i32, i32
  }
  func.func @transform_2(%arg0: i32) -> (i32, i32) {
    %c0_i32 = arith.constant 0 : i32
    %c0_i32_0 = arith.constant 0 : i32
    return %c0_i32, %arg0 : i32, i32
  }
  func.func @transform_3(%arg0: i32) -> (i32, i32) {
    %c0_i32 = arith.constant 0 : i32
    %c0_i32_0 = arith.constant 0 : i32
    return %arg0, %c0_i32 : i32, i32
  }
  func.func @transform_4(%arg0: i32) -> (i32, i32) {
    %c0_i32 = arith.constant 0 : i32
    %c0_i32_0 = arith.constant 0 : i32
    %c0_i32_1 = arith.constant 0 : i32
    return %c0_i32, %c0_i32_0 : i32, i32
  }
  func.func @transform_5(%arg0: i32) -> (i32, i32) {
    %c0_i32 = arith.constant 0 : i32
    %c0_i32_0 = arith.constant 0 : i32
    %c0_i32_1 = arith.constant 0 : i32
    return %c0_i32, %c0_i32_0 : i32, i32
  }
}

</mosaic_0001>

<llo_original>
// kernel: tpu_custom_call.1
$region0: #{tpu_custom_call.1}
  #allocation0 [shape = 'u32[]', space=smem, size = 0x4, offset = 0x4, fixed_abs, tag = 'smem constant byte address 0x4 - core index']
  #allocation1 [shape = 'u32[144,128]{1,0:T(1,128)}', space=vmem, size = 0x12000, scoped, tag = 'internal scratch']
  #allocation2 [shape = 'f32[8,128]{1,0:T(8,128)}', space=vmem, size = 0x1000, scoped, tag = 'scratch operand']
  %s0 = inlined_call_operand.hbm [shape: f32[8,128], index: 0, kind: input, shape index: {}]
  %s1 = inlined_call_operand.hbm [shape: bf16[128,128], index: 1, kind: input, shape index: {}]
  %s2 = inlined_call_operand.hbm [shape: f32[2,128], index: 2, kind: input, shape index: {}]
  %s3 = inlined_call_operand.hbm [shape: bf16[128,128], index: 3, kind: input, shape index: {}]
  %s4 = inlined_call_operand.hbm [shape: f32[2,128], index: 4, kind: input, shape index: {}]
  %s5 = inlined_call_operand.hbm [shape: f32[8,128], index: 5, kind: output, shape index: {}]
  %s6 = sld [smem:[#allocation0]]
  $region58: #{tpu_custom_call.1} parent=0
    _
  %s8 = ssub.s32 1, %s6
  %s9 = scalar_select 0, %s8, %s6
  $region1: #{tpu_custom_call.1} parent=0
    #allocation3 [shape = 'u8[4096]{0}', space=vmem, size = 0x1000, scoped, tag = 'input window, operand 0, single buffered']
    #allocation4 [shape = 's32[1]{0}', space=sflag, size = 0x4, scoped, tag = 'scoped memory for tpu_custom_call.1']
    #allocation5 [shape = 's32[1]{0}', space=sflag, size = 0x4, scoped, tag = 'scoped memory for tpu_custom_call.1']
    #allocation6 [shape = 'u8[32768]{0}', space=vmem, size = 0x8000, scoped, tag = 'input window, operand 1, single buffered']
    #allocation7 [shape = 's32[1]{0}', space=sflag, size = 0x4, scoped, tag = 'scoped memory for tpu_custom_call.1']
    #allocation8 [shape = 'u8[1024]{0}', space=vmem, size = 0x400, scoped, tag = 'input window, operand 2, single buffered']
    #allocation9 [shape = 'u8[32768]{0}', space=vmem, size = 0x8000, scoped, tag = 'input window, operand 3, single buffered']
    #allocation10 [shape = 's32[1]{0}', space=sflag, size = 0x4, scoped, tag = 'scoped memory for tpu_custom_call.1']
    #allocation11 [shape = 'u8[1024]{0}', space=vmem, size = 0x400, scoped, tag = 'input window, operand 4, single buffered']
    #allocation12 [shape = 'u8[4096]{0}', space=vmem, size = 0x1000, scoped, tag = 'output window, operand 0, single buffered']
    %10 = vsyncpa [#allocation4], 0
    %11 = vsyncpa [#allocation7], 0
    %12 = vsyncpa [#allocation10], 0
    %13 = vsyncpa [#allocation5], 0
    // Predicated region
    $region2: #{tpu_custom_call.1} parent=1 // pred_check
      _
    $region3: #{tpu_custom_call.1} parent=1 // pred_check_branch
      %15 = sbr.rel (0) target = $region5
    $region4: #{tpu_custom_call.1} parent=1 // pred_region
      %s17 = ssub.s32 128, 128
      %18 = vsyncadd [#allocation4], %s17
      %s20 = sshll.u32 [#allocation3], 4
      %s21 = int_to_ptr.vmem [resolvable:$true] %s20
      %23 = dma.hbm_to_vmem [thread:$0]  %s0, 128, %s21, [#allocation4]
    $region5: #{tpu_custom_call.1} parent=1 // pred_fallthru
      _
    // Predicated region
    $region6: #{tpu_custom_call.1} parent=1 // pred_check
      _
    $region7: #{tpu_custom_call.1} parent=1 // pred_check_branch
      %25 = sbr.rel (0) target = $region9
    $region8: #{tpu_custom_call.1} parent=1 // pred_region
      %s27 = ssub.s32 1024, 1024
      %28 = vsyncadd [#allocation7], %s27
      %s29 = sshll.u32 [#allocation6], 4
      %s30 = int_to_ptr.vmem [resolvable:$true] %s29
      %35 = dma.hbm_to_vmem [thread:$0]  %s1, 1024, %s30, [#allocation7], 64, 64, 4
    $region9: #{tpu_custom_call.1} parent=1 // pred_fallthru
      _
    // Predicated region
    $region10: #{tpu_custom_call.1} parent=1 // pred_check
      _
    $region11: #{tpu_custom_call.1} parent=1 // pred_check_branch
      %37 = sbr.rel (0) target = $region13
    $region12: #{tpu_custom_call.1} parent=1 // pred_region
      %s39 = ssub.s32 32, 32
      %40 = vsyncadd [#allocation7], %s39
      %s42 = sshll.u32 [#allocation8], 4
      %s43 = int_to_ptr.vmem [resolvable:$true] %s42
      %45 = dma.hbm_to_vmem [thread:$0]  %s2, 32, %s43, [#allocation7]
    $region13: #{tpu_custom_call.1} parent=1 // pred_fallthru
      _
    // Predicated region
    $region14: #{tpu_custom_call.1} parent=1 // pred_check
      _
    $region15: #{tpu_custom_call.1} parent=1 // pred_check_branch
      %47 = sbr.rel (0) target = $region17
    $region16: #{tpu_custom_call.1} parent=1 // pred_region
      %s49 = ssub.s32 1024, 1024
      %50 = vsyncadd [#allocation10], %s49
      %s51 = sshll.u32 [#allocation9], 4
      %s52 = int_to_ptr.vmem [resolvable:$true] %s51
      %57 = dma.hbm_to_vmem [thread:$0]  %s3, 1024, %s52, [#allocation10], 64, 64, 4
    $region17: #{tpu_custom_call.1} parent=1 // pred_fallthru
      _
    // Predicated region
    $region18: #{tpu_custom_call.1} parent=1 // pred_check
      _
    $region19: #{tpu_custom_call.1} parent=1 // pred_check_branch
      %59 = sbr.rel (0) target = $region21
    $region20: #{tpu_custom_call.1} parent=1 // pred_region
      %s61 = ssub.s32 32, 32
      %62 = vsyncadd [#allocation10], %s61
      %s64 = sshll.u32 [#allocation11], 4
      %s65 = int_to_ptr.vmem [resolvable:$true] %s64
      %67 = dma.hbm_to_vmem [thread:$0]  %s4, 32, %s65, [#allocation10]
    $region21: #{tpu_custom_call.1} parent=1 // pred_fallthru
      _
    // Predicated region
    $region22: #{tpu_custom_call.1} parent=1 // pred_check
      _
    $region23: #{tpu_custom_call.1} parent=1 // pred_check_branch
      %69 = sbr.rel (0) target = $region25
    $region24: #{tpu_custom_call.1} parent=1 // pred_region
      %70 = dma.done [#allocation4], 128
    $region25: #{tpu_custom_call.1} parent=1 // pred_fallthru
      _
    // Predicated region
    $region26: #{tpu_custom_call.1} parent=1 // pred_check
      _
    $region27: #{tpu_custom_call.1} parent=1 // pred_check_branch
      %72 = sbr.rel (0) target = $region29
    $region28: #{tpu_custom_call.1} parent=1 // pred_region
      %73 = dma.done [#allocation7], 1024
    $region29: #{tpu_custom_call.1} parent=1 // pred_fallthru
      _
    // Predicated region
    $region30: #{tpu_custom_call.1} parent=1 // pred_check
      _
    $region31: #{tpu_custom_call.1} parent=1 // pred_check_branch
      %75 = sbr.rel (0) target = $region33
    $region32: #{tpu_custom_call.1} parent=1 // pred_region
      %76 = dma.done [#allocation7], 32
    $region33: #{tpu_custom_call.1} parent=1 // pred_fallthru
      _
    // Predicated region
    $region34: #{tpu_custom_call.1} parent=1 // pred_check
      _
    $region35: #{tpu_custom_call.1} parent=1 // pred_check_branch
      %78 = sbr.rel (0) target = $region37
    $region36: #{tpu_custom_call.1} parent=1 // pred_region
      %79 = dma.done [#allocation10], 1024
    $region37: #{tpu_custom_call.1} parent=1 // pred_fallthru
      _
    // Predicated region
    $region38: #{tpu_custom_call.1} parent=1 // pred_check
      _
    $region39: #{tpu_custom_call.1} parent=1 // pred_check_branch
      %81 = sbr.rel (0) target = $region41
    $region40: #{tpu_custom_call.1} parent=1 // pred_region
      %82 = dma.done [#allocation10], 32
    $region41: #{tpu_custom_call.1} parent=1 // pred_fallthru
      _
    %p84 = scmp.eq.s32.totalorder 0, 0
    // Predicated region
    $region42: #{tpu_custom_call.1} parent=1 // pred_check
      %p85 = pneg %p84
    $region43: #{tpu_custom_call.1} parent=1 // pred_check_branch
      %87 = sbr.rel (%p85) target = $region45
    $region44: #{tpu_custom_call.1} parent=1 // pred_region
      %88 = vst [vmem:[#allocation2] sm:$0xff] 0.0
    $region45: #{tpu_custom_call.1} parent=1 // pred_fallthru
      _
    %v89 = vld [vmem:[#allocation3] sm:$0xff]
    %v90 = vpack.c.bf16 %v89, %v89
    %v91 = vld [vmem:[#allocation6] sm:$0xf]
    %v92 = vld [vmem:[#allocation6 + $0x4] sm:$0xf]
    %v93 = vld [vmem:[#allocation6 + $0x8] sm:$0xf]
    %v94 = vld [vmem:[#allocation6 + $0xc] sm:$0xf]
    %v95 = vld [vmem:[#allocation6 + $0x10] sm:$0xf]
    %v96 = vld [vmem:[#allocation6 + $0x14] sm:$0xf]
    %v97 = vld [vmem:[#allocation6 + $0x18] sm:$0xf]
    %v98 = vld [vmem:[#allocation6 + $0x1c] sm:$0xf]
    %v99 = vld [vmem:[#allocation6 + $0x20] sm:$0xf]
    %v100 = vld [vmem:[#allocation6 + $0x24] sm:$0xf]
    %v101 = vld [vmem:[#allocation6 + $0x28] sm:$0xf]
    %v102 = vld [vmem:[#allocation6 + $0x2c] sm:$0xf]
    %v103 = vld [vmem:[#allocation6 + $0x30] sm:$0xf]
    %v104 = vld [vmem:[#allocation6 + $0x34] sm:$0xf]
    %v105 = vld [vmem:[#allocation6 + $0x38] sm:$0xf]
    %v106 = vld [vmem:[#allocation6 + $0x3c] sm:$0xf]
    %v123 = vunpack.c.l.b16 %v91
    %v124 = vunpack.c.l.b16 %v92
    %v125 = vunpack.c.l.b16 %v93
    %v126 = vunpack.c.l.b16 %v94
    %v127 = vunpack.c.l.b16 %v95
    %v128 = vunpack.c.l.b16 %v96
    %v129 = vunpack.c.l.b16 %v97
    %v130 = vunpack.c.l.b16 %v98
    %v131 = vunpack.c.l.b16 %v99
    %v132 = vunpack.c.l.b16 %v100
    %v133 = vunpack.c.l.b16 %v101
    %v134 = vunpack.c.l.b16 %v102
    %v135 = vunpack.c.l.b16 %v103
    %v136 = vunpack.c.l.b16 %v104
    %v137 = vunpack.c.l.b16 %v105
    %v138 = vunpack.c.l.b16 %v106
    %v139 = vpack.c.b16 %v124, %v123
    %v140 = vpack.c.b16 %v126, %v125
    %v141 = vpack.c.b16 %v128, %v127
    %v142 = vpack.c.b16 %v130, %v129
    %v143 = vpack.c.b16 %v132, %v131
    %v144 = vpack.c.b16 %v134, %v133
    %v145 = vpack.c.b16 %v136, %v135
    %v146 = vpack.c.b16 %v138, %v137
    %155 = vmatprep.subr.bf16.mxu0 0
    %156 = vmatpush1.bf16.msra.mxu0 %v139
    %157 = vmatprep.subr.bf16.mxu0 0
    %158 = vmatpush1.bf16.msra.mxu0 %v140
    %159 = vmatprep.subr.bf16.mxu0 0
    %160 = vmatpush1.bf16.msra.mxu0 %v141
    %161 = vmatprep.subr.bf16.mxu0 0
    %162 = vmatpush1.bf16.msra.mxu0 %v142
    %163 = vmatprep.subr.bf16.mxu0 0
    %164 = vmatpush1.bf16.msra.mxu0 %v143
    %165 = vmatprep.subr.bf16.mxu0 0
    %166 = vmatpush1.bf16.msra.mxu0 %v144
    %167 = vmatprep.subr.bf16.mxu0 0
    %168 = vmatpush1.bf16.msra.mxu0 %v145
    %169 = vmatprep.subr.bf16.mxu0 0
    %170 = vmatpush1.bf16.msra.mxu0 %v146
    %171 = vmatprep.subr.bf16.mxu0 0
    %172 = vmatpush1.bf16.msra.mxu0 0
    %173 = vmatprep.subr.bf16.mxu0 0
    %174 = vmatpush1.bf16.msra.mxu0 0
    %175 = vmatprep.subr.bf16.mxu0 0
    %176 = vmatpush1.bf16.msra.mxu0 0
    %177 = vmatprep.subr.bf16.mxu0 0
    %178 = vmatpush1.bf16.msra.mxu0 0
    %179 = vmatprep.subr.bf16.mxu0 0
    %180 = vmatpush1.bf16.msra.mxu0 0
    %181 = vmatprep.subr.bf16.mxu0 0
    %182 = vmatpush1.bf16.msra.mxu0 0
    %183 = vmatprep.subr.bf16.mxu0 0
    %184 = vmatpush1.bf16.msra.mxu0 0
    %185 = vmatprep.subr.bf16.mxu0 0
    %186 = vmatpush1.bf16.msra.mxu0 0
    %187 = vmatprep.mubr.bf16.mxu0 0
    %188 = vmatmul.mubr.bf16.gmra.mrb[0].mxu0 %v90
    %v189 = vpop.f32.mrb[0].mxu0
    %v190 = vadd.f32 0.0, %v189
    %v191 = vpop.f32.mrb[0].mxu0
    %v192 = vpop.f32.mrb[0].mxu0
    %v193 = vpop.f32.mrb[0].mxu0
    %194 = vdwg.mxu0
    %v195 = vrot.slane %v190, 4
    %v196 = vadd.f32 %v190, %v195
    %v197 = vrot.slane %v196, 2
    %v198 = vadd.f32 %v196, %v197
    %v199 = vrot.slane %v198, 1
    %v200 = vadd.f32 %v198, %v199
    %v201 = vmul.f32 %v200, 0.125
    %v202 = vsub.f32 %v190, %v201
    %v203 = vmul.f32 %v202, %v202
    %v204 = vrot.slane %v203, 4
    %v205 = vadd.f32 %v203, %v204
    %v206 = vrot.slane %v205, 2
    %v207 = vadd.f32 %v205, %v206
    %v208 = vrot.slane %v207, 1
    %v209 = vadd.f32 %v207, %v208
    %v210 = vmul.f32 %v209, 0.125
    %v211 = vld [vmem:[#allocation8] sm:$0x3]
    %v212 = vadd.f32 %v210, 1e-05
    %v213 = vrsqrt.pop %v212
    %v214 = vmul.f32 %v211, %v213
    %v215 = vmul.f32 %v201, %v214
    %v217 = vrot.slane %v215, 7
    %v219 = vsub.f32 %v211, %v217
    %v220 = vlaneseq
    %v221 = vshrl.u32 %v220, 7
    %v222 = vsub.s32 0, %v221
    %v223 = vrot.slane %v214, %v222
    %v224 = vmul.f32 %v190, %v223
    %v225 = vlaneseq
    %v226 = vshrl.u32 %v225, 7
    %v227 = vsub.s32 1, %v226
    %v228 = vrot.slane %v219, %v227
    %v229 = vadd.f32 %v224, %v228
    %v230 = vmax.f32 %v229, 0.0
    %v231 = vld [vmem:[#allocation2] sm:$0xff]
    %v232 = vpack.c.bf16 %v230, %v230
    %v233 = vld [vmem:[#allocation9] sm:$0xf]
    %v234 = vld [vmem:[#allocation9 + $0x4] sm:$0xf]
    %v235 = vld [vmem:[#allocation9 + $0x8] sm:$0xf]
    %v236 = vld [vmem:[#allocation9 + $0xc] sm:$0xf]
    %v237 = vld [vmem:[#allocation9 + $0x10] sm:$0xf]
    %v238 = vld [vmem:[#allocation9 + $0x14] sm:$0xf]
    %v239 = vld [vmem:[#allocation9 + $0x18] sm:$0xf]
    %v240 = vld [vmem:[#allocation9 + $0x1c] sm:$0xf]
    %v241 = vld [vmem:[#allocation9 + $0x20] sm:$0xf]
    %v242 = vld [vmem:[#allocation9 + $0x24] sm:$0xf]
    %v243 = vld [vmem:[#allocation9 + $0x28] sm:$0xf]
    %v244 = vld [vmem:[#allocation9 + $0x2c] sm:$0xf]
    %v245 = vld [vmem:[#allocation9 + $0x30] sm:$0xf]
    %v246 = vld [vmem:[#allocation9 + $0x34] sm:$0xf]
    %v247 = vld [vmem:[#allocation9 + $0x38] sm:$0xf]
    %v248 = vld [vmem:[#allocation9 + $0x3c] sm:$0xf]
    %v265 = vunpack.c.l.b16 %v233
    %v266 = vunpack.c.l.b16 %v234
    %v267 = vunpack.c.l.b16 %v235
    %v268 = vunpack.c.l.b16 %v236
    %v269 = vunpack.c.l.b16 %v237
    %v270 = vunpack.c.l.b16 %v238
    %v271 = vunpack.c.l.b16 %v239
    %v272 = vunpack.c.l.b16 %v240
    %v273 = vunpack.c.l.b16 %v241
    %v274 = vunpack.c.l.b16 %v242
    %v275 = vunpack.c.l.b16 %v243
    %v276 = vunpack.c.l.b16 %v244
    %v277 = vunpack.c.l.b16 %v245
    %v278 = vunpack.c.l.b16 %v246
    %v279 = vunpack.c.l.b16 %v247
    %v280 = vunpack.c.l.b16 %v248
    %v281 = vpack.c.b16 %v266, %v265
    %v282 = vpack.c.b16 %v268, %v267
    %v283 = vpack.c.b16 %v270, %v269
    %v284 = vpack.c.b16 %v272, %v271
    %v285 = vpack.c.b16 %v274, %v273
    %v286 = vpack.c.b16 %v276, %v275
    %v287 = vpack.c.b16 %v278, %v277
    %v288 = vpack.c.b16 %v280, %v279
    %297 = vmatprep.subr.bf16.mxu0 0
    %298 = vmatpush1.bf16.msra.mxu0 %v281
    %299 = vmatprep.subr.bf16.mxu0 0
    %300 = vmatpush1.bf16.msra.mxu0 %v282
    %301 = vmatprep.subr.bf16.mxu0 0
    %302 = vmatpush1.bf16.msra.mxu0 %v283
    %303 = vmatprep.subr.bf16.mxu0 0
    %304 = vmatpush1.bf16.msra.mxu0 %v284
    %305 = vmatprep.subr.bf16.mxu0 0
    %306 = vmatpush1.bf16.msra.mxu0 %v285
    %307 = vmatprep.subr.bf16.mxu0 0
    %308 = vmatpush1.bf16.msra.mxu0 %v286
    %309 = vmatprep.subr.bf16.mxu0 0
    %310 = vmatpush1.bf16.msra.mxu0 %v287
    %311 = vmatprep.subr.bf16.mxu0 0
    %312 = vmatpush1.bf16.msra.mxu0 %v288
    %313 = vmatprep.subr.bf16.mxu0 0
    %314 = vmatpush1.bf16.msra.mxu0 0
    %315 = vmatprep.subr.bf16.mxu0 0
    %316 = vmatpush1.bf16.msra.mxu0 0
    %317 = vmatprep.subr.bf16.mxu0 0
    %318 = vmatpush1.bf16.msra.mxu0 0
    %319 = vmatprep.subr.bf16.mxu0 0
    %320 = vmatpush1.bf16.msra.mxu0 0
    %321 = vmatprep.subr.bf16.mxu0 0
    %322 = vmatpush1.bf16.msra.mxu0 0
    %323 = vmatprep.subr.bf16.mxu0 0
    %324 = vmatpush1.bf16.msra.mxu0 0
    %325 = vmatprep.subr.bf16.mxu0 0
    %326 = vmatpush1.bf16.msra.mxu0 0
    %327 = vmatprep.subr.bf16.mxu0 0
    %328 = vmatpush1.bf16.msra.mxu0 0
    %329 = vmatprep.mubr.bf16.mxu0 0
    %330 = vmatmul.mubr.bf16.gmra.mrb[0].mxu0 %v232
    %v331 = vpop.f32.mrb[0].mxu0
    %v332 = vadd.f32 0.0, %v331
    %v333 = vpop.f32.mrb[0].mxu0
    %v334 = vpop.f32.mrb[0].mxu0
    %v335 = vpop.f32.mrb[0].mxu0
    %336 = vdwg.mxu0
    %v337 = vadd.f32 %v231, %v332
    %338 = vst [vmem:[#allocation2] sm:$0xff] %v337
    // Predicated region
    $region46: #{tpu_custom_call.1} parent=1 // pred_check
      %p339 = pneg %p84
    $region47: #{tpu_custom_call.1} parent=1 // pred_check_branch
      %341 = sbr.rel (%p339) target = $region49
    $region48: #{tpu_custom_call.1} parent=1 // pred_region
      %v342 = vld [vmem:[#allocation2] sm:$0xff]
      %v343 = vrot.slane %v342, 4
      %v344 = vadd.f32 %v342, %v343
      %v345 = vrot.slane %v344, 2
      %v346 = vadd.f32 %v344, %v345
      %v347 = vrot.slane %v346, 1
      %v348 = vadd.f32 %v346, %v347
      %v349 = vmul.f32 %v348, 0.125
      %v350 = vsub.f32 %v342, %v349
      %v351 = vmul.f32 %v350, %v350
      %v352 = vrot.slane %v351, 4
      %v353 = vadd.f32 %v351, %v352
      %v354 = vrot.slane %v353, 2
      %v355 = vadd.f32 %v353, %v354
      %v356 = vrot.slane %v355, 1
      %v357 = vadd.f32 %v355, %v356
      %v358 = vmul.f32 %v357, 0.125
      %v359 = vld [vmem:[#allocation11] sm:$0x3]
      %v360 = vadd.f32 %v358, 1e-05
      %v361 = vrsqrt.pop %v360
      %v362 = vmul.f32 %v359, %v361
      %v363 = vmul.f32 %v349, %v362
      %v365 = vrot.slane %v363, 7
      %v367 = vsub.f32 %v359, %v365
      %v368 = vlaneseq
      %v369 = vshrl.u32 %v368, 7
      %v370 = vsub.s32 0, %v369
      %v371 = vrot.slane %v362, %v370
      %v372 = vmul.f32 %v342, %v371
      %v373 = vlaneseq
      %v374 = vshrl.u32 %v373, 7
      %v375 = vsub.s32 1, %v374
      %v376 = vrot.slane %v367, %v375
      %v377 = vadd.f32 %v372, %v376
      %v378 = vadd.f32 %v377, %v89
      %v379 = vmax.f32 %v378, 0.0
      %380 = vst [vmem:[#allocation12] sm:$0xff] %v379
    $region49: #{tpu_custom_call.1} parent=1 // pred_fallthru
      _
    // Predicated region
    $region50: #{tpu_custom_call.1} parent=1 // pred_check
      _
    $region51: #{tpu_custom_call.1} parent=1 // pred_check_branch
      %382 = sbr.rel (0) target = $region53
    $region52: #{tpu_custom_call.1} parent=1 // pred_region
      %s384 = ssub.s32 128, 128
      %385 = vsyncadd [#allocation5], %s384
      %s387 = sshll.u32 [#allocation12], 4
      %s388 = int_to_ptr.vmem [resolvable:$true] %s387
      %390 = dma.vmem_to_hbm [thread:$0]  %s388, 128, %s5, [#allocation5]
    $region53: #{tpu_custom_call.1} parent=1 // pred_fallthru
      _
    // Predicated region
    $region54: #{tpu_custom_call.1} parent=1 // pred_check
      _
    $region55: #{tpu_custom_call.1} parent=1 // pred_check_branch
      %392 = sbr.rel (0) target = $region57
    $region56: #{tpu_custom_call.1} parent=1 // pred_region
      %393 = dma.done [#allocation5], 128
    $region57: #{tpu_custom_call.1} parent=1 // pred_fallthru
      _
    %394 = vsyncpa [#allocation4], 1
    %395 = vsyncpa [#allocation7], 1
    %396 = vsyncpa [#allocation10], 1
    %397 = vsyncpa [#allocation5], 1

</llo_original>
